<compile_context>
chip_gen: v7x
topology: tpu7x:2x2x1
jax: 0.10.0
libtpu: 0.0.40
codegen_flags: <defaults>
</compile_context>

<pallas_src>
import math

import jax
import jax.numpy as jnp
from jax.experimental import pallas as pl
from jax.experimental.pallas import tpu as pltpu

NUM_FEATURES = 4
NUM_CLASSES = 3
CLS_PAD = 8          # classes padded onto one full sublane tile


def _round_up(n, m):
    return ((n + m - 1) // m) * m


def kernel(xt_ref, w_ref, b_ref, o_ref):
    """xt_ref: [4, TM] f32, w_ref: [8, 4] f32, b_ref: [8, 1] f32, o_ref: [8, TM] f32."""
    xt = xt_ref[...]                                   # [4, TM]
    w = w_ref[...]                                     # [8, 4]   (VMEM-resident)
    # K=4 contraction as 4 broadcast FMAs on the VPU; MXU is pointless at K=4.
    acc = w[:, 0:1] * xt[0:1, :]                       # [8,1]*[1,TM] -> [8,TM]
    for f in range(1, xt_ref.shape[0]):
        acc = acc + w[:, f:f + 1] * xt[f:f + 1, :]
    logits = acc + b_ref[...]                          # padded class rows -> -1e30

    # Numerically stable softmax over the (padded, sublane) class axis.  Padded
    # rows carry zero weights and a -1e30 bias, so exp underflows to exactly 0.
    m = jnp.max(logits, axis=0, keepdims=True)         # [1, TM]
    e = jnp.exp(logits - m)                            # [8, TM]
    denom = jnp.sum(e, axis=0, keepdims=True)          # [1, TM]
    inv = pl.reciprocal(denom, approx=True)            # EUP slot (≈ free)
    inv = inv * (2.0 - denom * inv)                    # one Newton step -> fp32-grade
    o_ref[...] = e * inv


def fold_params(params):
    """Collapse the three affine layers into one [4, 3] affine map, laid out
    classes-on-sublanes and padded 3 -> 8 for the kernel:
      w_cls: [8, 4] (rows = classes, padded rows zero)
      b_cls: [8, 1] (padded rows -1e30 so they vanish in the softmax)."""
    w1, b1, w2, b2, w3, b3 = (params["w1"], params["b1"], params["w2"],
                              params["b2"], params["w3"], params["b3"])
    w_eff = w1 @ w2 @ w3                                # [4, 3]
    b_eff = (b1 @ w2 + b2) @ w3 + b3                    # [1, 3]
    pad = CLS_PAD - NUM_CLASSES
    w_cls = jnp.pad(w_eff.T, ((0, pad), (0, 0)))        # [8, 4], zero padded rows
    b_cls = jnp.concatenate(
        [b_eff.T, jnp.full((pad, 1), -1e30, jnp.float32)], axis=0)   # [8, 1]
    return w_cls, b_cls


def _choose_tiling(B, tm_max, bucket):
    """Pick (lane-tile tm, padded batch B_pad).  Bucketing bounds jit recompiles;
    cdiv-based tm bounds padding waste; >=2 blocks keeps both v7x TCs busy."""
    if bucket:
        cols = max(128, pl.next_power_of_2(B))          # power-of-two bucket
    else:
        cols = _round_up(B, 128)
    nblk = pl.cdiv(cols, tm_max)
    if cols >= 256:
        nblk = max(nblk, 2)                             # v7x: 2 TensorCores
    tm = _round_up(pl.cdiv(cols, nblk), 128)
    return tm, nblk * tm


def simple_network_forward(x, w_cls, b_cls, *, tm_max=1024, min_kernel_batch=0,
                           bucket=True):
    """x: [B, 4] f32; w_cls: [8, 4]; b_cls: [8, 1]. Returns softmax probs [B, 3]."""
    B, F = x.shape

    if B < min_kernel_batch:
        # Launch-overhead-bound regime: one fused XLA op is as fast as the kernel.
        logits = x @ w_cls[:NUM_CLASSES].T + b_cls[:NUM_CLASSES, 0]
        return jax.nn.softmax(logits, axis=-1)

    tm, B_pad = _choose_tiling(B, tm_max, bucket)
    xt = x.T                                            # [4, B]  (batch on lanes)
    if B_pad != B:
        xt = jnp.pad(xt, ((0, 0), (0, B_pad - B)))      # pad cols -> full blocks

    out = pl.pallas_call(
        kernel,
        out_shape=jax.ShapeDtypeStruct((CLS_PAD, B_pad), jnp.float32),
        grid=(B_pad // tm,),
        in_specs=[
            pl.BlockSpec((F, tm), lambda i: (0, i)),          # x^T, lane-dense
            pl.BlockSpec((CLS_PAD, F), lambda i: (0, 0)),     # weights: VMEM-resident
            pl.BlockSpec((CLS_PAD, 1), lambda i: (0, 0)),     # bias:    VMEM-resident
        ],
        out_specs=pl.BlockSpec((CLS_PAD, tm), lambda i: (0, i)),
        compiler_params=pltpu.CompilerParams(
            dimension_semantics=("parallel",)),               # shard over v7x's 2 TCs
    )(xt, w_cls, b_cls)
    return out[:NUM_CLASSES, :B].T                            # [B, 3]


def init_params(key):
    """Deterministic init mimicking PyTorch nn.Linear default (U[-1/sqrt(fan_in), ...]).
    Weights stored as [in, out] so forward is x @ W + b (== PyTorch x @ W.T + b)."""
    def linear(key, fan_in, fan_out):
        kw, kb = jax.random.split(key)
        bound = 1.0 / math.sqrt(fan_in)
        w = jax.random.uniform(kw, (fan_in, fan_out), jnp.float32, -bound, bound)
        b = jax.random.uniform(kb, (1, fan_out), jnp.float32, -bound, bound)
        return w, b

    k1, k2, k3 = jax.random.split(key, 3)
    w1, b1 = linear(k1, NUM_FEATURES, 100)
    w2, b2 = linear(k2, 100, 100)
    w3, b3 = linear(k3, 100, NUM_CLASSES)
    return {"w1": w1, "b1": b1, "w2": w2, "b2": b2, "w3": w3, "b3": b3}


def _reference_forward(x, p):
    """Pure-JAX reference with the ORIGINAL 3-layer structure (module semantics)."""
    h1 = x @ p["w1"] + p["b1"]
    h2 = h1 @ p["w2"] + p["b2"]
    z = h2 @ p["w3"] + p["b3"]
    return jax.nn.softmax(z, axis=1)


if __name__ == "__main__":
    key = jax.random.PRNGKey(0)
    k_params, k_x = jax.random.split(key)

    params = init_params(k_params)
    w_cls, b_cls = fold_params(params)           # one-time fold, outside the hot path

    # Small deterministic input consistent with the module: batch=8, 4 features.
    x = jax.random.normal(k_x, (8, NUM_FEATURES), jnp.float32)

    fwd = jax.jit(simple_network_forward)        # kernel path (min_kernel_batch=0)
    out = jax.block_until_ready(fwd(x, w_cls, b_cls))

    ref = _reference_forward(x, params)
    assert out.shape == (8, NUM_CLASSES)
    assert jnp.allclose(out, ref, atol=1e-4, rtol=1e-4), \
        float(jnp.max(jnp.abs(out - ref)))
    assert jnp.allclose(jnp.sum(out, axis=1), 1.0, atol=1e-4)

    # Exercise the multi-block grid (>=2 parallel steps) + column-padding path.
    k_x2 = jax.random.fold_in(k_x, 1)
    x2 = jax.random.normal(k_x2, (260, NUM_FEATURES), jnp.float32)
    out2 = jax.block_until_ready(
        simple_network_forward(x2, w_cls, b_cls, tm_max=1024))
    ref2 = _reference_forward(x2, params)
    assert out2.shape == (260, NUM_CLASSES)
    assert jnp.allclose(out2, ref2, atol=1e-4, rtol=1e-4), \
        float(jnp.max(jnp.abs(out2 - ref2)))

    # Exercise the small-batch plain-XLA fallback.
    out3 = jax.block_until_ready(
        simple_network_forward(x, w_cls, b_cls, min_kernel_batch=256))
    assert jnp.allclose(out3, ref, atol=1e-4, rtol=1e-4)

    print("KERNEL_OK")
</pallas_src>

<mosaic_0001>
module attributes {stable_mosaic.version = 11 : i64} {
  func.func @kernel(%arg0: i32, %arg1: memref<4x128xf32, #tpu.memory_space<vmem>>, %arg2: memref<8x4xf32, #tpu.memory_space<vmem>>, %arg3: memref<8x1xf32, #tpu.memory_space<vmem>>, %arg4: memref<8x128xf32, #tpu.memory_space<vmem>>) attributes {dimension_semantics = [#tpu.dimension_semantics<parallel>], iteration_bounds = array<i64: 1>, scalar_prefetch = 0 : i64, scratch_operands = 0 : i64, tpu.core_type = #tpu.core_type<tc>, window_params = [{transform_indices = @transform_0, window_bounds = array<i64: 4, 128>}, {pipeline_mode = #tpu.pipeline_mode<synchronous>, transform_indices = @transform_1, window_bounds = array<i64: 8, 4>}, {pipeline_mode = #tpu.pipeline_mode<synchronous>, transform_indices = @transform_2, window_bounds = array<i64: 8, 1>}, {transform_indices = @transform_3, window_bounds = array<i64: 8, 128>}]} {
    %c0 = arith.constant 0 : index
    %c0_0 = arith.constant 0 : index
    %0 = vector.load %arg1[%c0, %c0_0] : memref<4x128xf32, #tpu.memory_space<vmem>>, vector<4x128xf32>
    %c0_1 = arith.constant 0 : index
    %c0_2 = arith.constant 0 : index
    %1 = vector.load %arg2[%c0_1, %c0_2] : memref<8x4xf32, #tpu.memory_space<vmem>>, vector<8x4xf32>
    %2 = vector.extract_strided_slice %1 {offsets = [0, 0], sizes = [8, 1], strides = [1, 1]} : vector<8x4xf32> to vector<8x1xf32>
    %3 = vector.extract_strided_slice %0 {offsets = [0, 0], sizes = [1, 128], strides = [1, 1]} : vector<4x128xf32> to vector<1x128xf32>
    %4 = vector.broadcast %2 : vector<8x1xf32> to vector<8x128xf32>
    %5 = vector.broadcast %3 : vector<1x128xf32> to vector<8x128xf32>
    %6 = arith.mulf %4, %5 : vector<8x128xf32>
    %7 = vector.extract_strided_slice %1 {offsets = [0, 1], sizes = [8, 1], strides = [1, 1]} : vector<8x4xf32> to vector<8x1xf32>
    %8 = vector.extract_strided_slice %0 {offsets = [1, 0], sizes = [1, 128], strides = [1, 1]} : vector<4x128xf32> to vector<1x128xf32>
    %9 = vector.broadcast %7 : vector<8x1xf32> to vector<8x128xf32>
    %10 = vector.broadcast %8 : vector<1x128xf32> to vector<8x128xf32>
    %11 = arith.mulf %9, %10 : vector<8x128xf32>
    %12 = arith.addf %6, %11 : vector<8x128xf32>
    %13 = vector.extract_strided_slice %1 {offsets = [0, 2], sizes = [8, 1], strides = [1, 1]} : vector<8x4xf32> to vector<8x1xf32>
    %14 = vector.extract_strided_slice %0 {offsets = [2, 0], sizes = [1, 128], strides = [1, 1]} : vector<4x128xf32> to vector<1x128xf32>
    %15 = vector.broadcast %13 : vector<8x1xf32> to vector<8x128xf32>
    %16 = vector.broadcast %14 : vector<1x128xf32> to vector<8x128xf32>
    %17 = arith.mulf %15, %16 : vector<8x128xf32>
    %18 = arith.addf %12, %17 : vector<8x128xf32>
    %19 = vector.extract_strided_slice %1 {offsets = [0, 3], sizes = [8, 1], strides = [1, 1]} : vector<8x4xf32> to vector<8x1xf32>
    %20 = vector.extract_strided_slice %0 {offsets = [3, 0], sizes = [1, 128], strides = [1, 1]} : vector<4x128xf32> to vector<1x128xf32>
    %21 = vector.broadcast %19 : vector<8x1xf32> to vector<8x128xf32>
    %22 = vector.broadcast %20 : vector<1x128xf32> to vector<8x128xf32>
    %23 = arith.mulf %21, %22 : vector<8x128xf32>
    %24 = arith.addf %18, %23 : vector<8x128xf32>
    %c0_3 = arith.constant 0 : index
    %c0_4 = arith.constant 0 : index
    %25 = vector.load %arg3[%c0_3, %c0_4] : memref<8x1xf32, #tpu.memory_space<vmem>>, vector<8x1xf32>
    %26 = vector.broadcast %25 : vector<8x1xf32> to vector<8x128xf32>
    %27 = arith.addf %24, %26 : vector<8x128xf32>
    %cst = arith.constant dense<0xFF800000> : vector<128xf32>
    %28 = vector.multi_reduction <maximumf>, %27, %cst [0] : vector<8x128xf32> to vector<128xf32>
    %29 = vector.shape_cast %28 : vector<128xf32> to vector<1x128xf32>
    %30 = vector.broadcast %29 : vector<1x128xf32> to vector<8x128xf32>
    %31 = arith.subf %27, %30 : vector<8x128xf32>
    %32 = math.exp %31 : vector<8x128xf32>
    %cst_5 = arith.constant dense<0.000000e+00> : vector<128xf32>
    %33 = vector.multi_reduction <add>, %32, %cst_5 [0] : vector<8x128xf32> to vector<128xf32>
    %34 = vector.shape_cast %33 : vector<128xf32> to vector<1x128xf32>
    %35 = tpu.reciprocal %34 {approx = true} : vector<1x128xf32> -> vector<1x128xf32>
    %36 = arith.mulf %34, %35 : vector<1x128xf32>
    %cst_6 = arith.constant 2.000000e+00 : f32
    %37 = vector.broadcast %cst_6 : f32 to vector<1x128xf32>
    %38 = arith.subf %37, %36 : vector<1x128xf32>
    %39 = arith.mulf %35, %38 : vector<1x128xf32>
    %40 = vector.broadcast %39 : vector<1x128xf32> to vector<8x128xf32>
    %41 = arith.mulf %32, %40 : vector<8x128xf32>
    %c0_7 = arith.constant 0 : index
    %c0_8 = arith.constant 0 : index
    %42 = vector.load %arg4[%c0_7, %c0_8] : memref<8x128xf32, #tpu.memory_space<vmem>>, vector<8x128xf32>
    tpu.vector_store %arg4[%c0_7, %c0_8], %41 {strides = array<i32>} : memref<8x128xf32, #tpu.memory_space<vmem>>, vector<8x128xf32>,
    return
  }
  func.func @transform_0(%arg0: i32) -> (i32, i32) {
    %c0_i32 = arith.constant 0 : i32
    %c0_i32_0 = arith.constant 0 : i32
    return %c0_i32, %arg0 : i32, i32
  }
  func.func @transform_1(%arg0: i32) -> (i32, i32) {
    %c0_i32 = arith.constant 0 : i32
    %c0_i32_0 = arith.constant 0 : i32
    %c0_i32_1 = arith.constant 0 : i32
    return %c0_i32, %c0_i32_0 : i32, i32
  }
  func.func @transform_2(%arg0: i32) -> (i32, i32) {
    %c0_i32 = arith.constant 0 : i32
    %c0_i32_0 = arith.constant 0 : i32
    %c0_i32_1 = arith.constant 0 : i32
    return %c0_i32, %c0_i32_0 : i32, i32
  }
  func.func @transform_3(%arg0: i32) -> (i32, i32) {
    %c0_i32 = arith.constant 0 : i32
    %c0_i32_0 = arith.constant 0 : i32
    return %c0_i32, %arg0 : i32, i32
  }
}

</mosaic_0001>

<llo_original>
// kernel: simple_network_forward.1
$region0: #{simple_network_forward.1}
  #allocation0 [shape = 'u32[]', space=smem, size = 0x4, offset = 0x4, fixed_abs, tag = 'smem constant byte address 0x4 - core index']
  #allocation1 [shape = 'u32[144,128]{1,0:T(1,128)}', space=vmem, size = 0x12000, scoped, tag = 'internal scratch']
  %s0 = inlined_call_operand.vmem [shape: f32[4,128], index: 0, kind: input, shape index: {}]
  %s1 = inlined_call_operand.vmem [shape: f32[8,4], index: 1, kind: input, shape index: {}]
  %s2 = inlined_call_operand.vmem [shape: f32[8,1], index: 2, kind: input, shape index: {}]
  %s3 = inlined_call_operand.vmem [shape: f32[8,128], index: 3, kind: output, shape index: {}]
  %s4 = sld [smem:[#allocation0]]
  $region22: #{simple_network_forward.1} parent=0
    _
  %s6 = ssub.s32 1, %s4
  %s7 = scalar_select 0, %s6, %s4
  // Predicated region
  $region2: #{simple_network_forward.1} parent=0 // pred_check
    _
  $region3: #{simple_network_forward.1} parent=0 // pred_check_branch
    %9 = sbr.rel (0) target = $region5
  $region4: #{simple_network_forward.1} parent=0 // pred_region
    _
  $region5: #{simple_network_forward.1} parent=0 // pred_fallthru
    _
  // Predicated region
  $region6: #{simple_network_forward.1} parent=0 // pred_check
    _
  $region7: #{simple_network_forward.1} parent=0 // pred_check_branch
    %11 = sbr.rel (0) target = $region9
  $region8: #{simple_network_forward.1} parent=0 // pred_region
    _
  $region9: #{simple_network_forward.1} parent=0 // pred_fallthru
    _
  // Predicated region
  $region10: #{simple_network_forward.1} parent=0 // pred_check
    _
  $region11: #{simple_network_forward.1} parent=0 // pred_check_branch
    %13 = sbr.rel (0) target = $region13
  $region12: #{simple_network_forward.1} parent=0 // pred_region
    _
  $region13: #{simple_network_forward.1} parent=0 // pred_fallthru
    _
  %v14 = vld [vmem:[%s0] sm:$0xf]
  %v15 = vld [vmem:[%s1] sm:$0xff]
  %17 = vset.pattern.permute.xlu0 0
  %18 = vperm.xlu0 %17, %v15
  %v19 = vpop.permute.xlu0 %18
  %v21 = vlaneseq
  %v22 = vshrl.u32 %v21, 7
  %v23 = vsub.s32 0, %v22
  %v24 = vrot.slane %v14, %v23
  %v25 = vmul.f32 %v19, %v24
  %26 = vset.pattern.permute.xlu0 1
  %27 = vperm.xlu0 %26, %v15
  %v28 = vpop.permute.xlu0 %27
  %v30 = vlaneseq
  %v31 = vshrl.u32 %v30, 7
  %v32 = vsub.s32 1, %v31
  %v33 = vrot.slane %v14, %v32
  %v34 = vmul.f32 %v28, %v33
  %v35 = vadd.f32 %v25, %v34
  %36 = vset.pattern.permute.xlu0 2
  %37 = vperm.xlu0 %36, %v15
  %v38 = vpop.permute.xlu0 %37
  %v40 = vlaneseq
  %v41 = vshrl.u32 %v40, 7
  %v42 = vsub.s32 2, %v41
  %v43 = vrot.slane %v14, %v42
  %v44 = vmul.f32 %v38, %v43
  %v45 = vadd.f32 %v35, %v44
  %46 = vset.pattern.permute.xlu0 3
  %47 = vperm.xlu0 %46, %v15
  %v48 = vpop.permute.xlu0 %47
  %v50 = vlaneseq
  %v51 = vshrl.u32 %v50, 7
  %v52 = vsub.s32 3, %v51
  %v53 = vrot.slane %v14, %v52
  %v54 = vmul.f32 %v48, %v53
  %v55 = vadd.f32 %v45, %v54
  %v56 = vld [vmem:[%s2] sm:$0xff]
  %58 = vset.pattern.permute.xlu0 0
  %59 = vperm.xlu0 %58, %v56
  %v60 = vpop.permute.xlu0 %59
  %v62 = vadd.f32 %v55, %v60
  %v63 = vrot.slane %v62, 4
  %v64 = vmax.f32 %v62, %v63
  %v65 = vrot.slane %v64, 2
  %v66 = vmax.f32 %v64, %v65
  %v67 = vrot.slane %v66, 1
  %v68 = vmax.f32 %v66, %v67
  %v69 = vsub.f32 %v62, %v68
  %v70 = vmul.f32 %v69, 1.442695
  %v71 = vpow.pop %v70
  %v72 = vrot.slane %v71, 4
  %v73 = vadd.f32 %v71, %v72
  %v74 = vrot.slane %v73, 2
  %v75 = vadd.f32 %v73, %v74
  %v76 = vrot.slane %v75, 1
  %v77 = vadd.f32 %v75, %v76
  %v78 = vrcp.pop %v77
  %v79 = vmul.f32 %v77, %v78
  %v80 = vsub.f32 2.0, %v79
  %v81 = vmul.f32 %v78, %v80
  %v82 = vmul.f32 %v71, %v81
  %83 = vst [vmem:[%s3] sm:$0xff] %v82
  // Predicated region
  $region14: #{simple_network_forward.1} parent=0 // pred_check
    _
  $region15: #{simple_network_forward.1} parent=0 // pred_check_branch
    %85 = sbr.rel (0) target = $region17
  $region16: #{simple_network_forward.1} parent=0 // pred_region
    _
  $region17: #{simple_network_forward.1} parent=0 // pred_fallthru
    _
  // Predicated region
  $region18: #{simple_network_forward.1} parent=0 // pred_check
    _
  $region19: #{simple_network_forward.1} parent=0 // pred_check_branch
    %87 = sbr.rel (0) target = $region21
  $region20: #{simple_network_forward.1} parent=0 // pred_region
    _
  $region21: #{simple_network_forward.1} parent=0 // pred_fallthru
    _

</llo_original>
